<compile_context>
chip_gen: v5e
topology: v5e:2x2
jax: 0.10.0
libtpu: 0.0.40
codegen_flags: <defaults>
</compile_context>

<pallas_src>
import jax
import jax.numpy as jnp
from jax.experimental import pallas as pl
from jax.experimental.pallas import tpu as pltpu

_LANE = 128     # lane width (last-dim granularity)
_SUBLANE = 8    # f32 sublane granularity (second-to-last dim)
_TB_MAX = 2048  # max batch tile (mem-bound tiles hit ~85% of roofline by 512-1024)


def _round_up(x, m):
    return ((x + m - 1) // m) * m


def _cdiv(a, b):
    return (a + b - 1) // b


def _mlp_kernel(t_ref, i_ref, w1t_t_ref, w1t_i_ref, b1_ref, w2t_ref, b2_ref, o_ref):
    # fc1, split over the two modalities (replaces the concat):
    #   (TB, T)bf16 @ (T, Hp)bf16 + (TB, I)bf16 @ (I, Hp)bf16  -> f32 acc, + b1(f32)
    h = (
        jnp.dot(t_ref[...], w1t_t_ref[...], preferred_element_type=jnp.float32)
        + jnp.dot(i_ref[...], w1t_i_ref[...], preferred_element_type=jnp.float32)
        + b1_ref[...]
    )
    # ReLU in f32 (correct on all generations incl. v5e — no bf16 VPU there).
    h = jnp.maximum(h, 0.0)
    # dropout -> identity (eval mode)
    # fc2: (TB, Hp)bf16 @ (Hp, O)bf16 -> f32 acc, + b2(f32).  O is NOT lane-padded;
    # the (TB, O) store is a masked vst but writes 16x fewer HBM bytes.
    y = (
        jnp.dot(h.astype(w2t_ref.dtype), w2t_ref[...],
                preferred_element_type=jnp.float32)
        + b2_ref[...]
    )
    o_ref[...] = jax.nn.sigmoid(y).astype(o_ref.dtype)


@jax.jit
def multimodal_classifier_forward(text_emb, image_emb, w1, b1, w2, b2):
    """text_emb: (B, T), image_emb: (B, I); w1: (H, T+I), b1: (H,),
    w2: (O, H), b2: (O,).  Returns (B, O) float32."""
    B, T = text_emb.shape
    _, I = image_emb.shape
    H = w1.shape[0]
    O = w2.shape[0]

    # --- batch tiling: remainder-aware, >=2 programs once B > 8 (v7x 2 TCs) --
    if B <= _SUBLANE:
        TB = _SUBLANE
        n_prog = 1
    else:
        n_prog = max(2, _cdiv(B, _TB_MAX))
        TB = _round_up(_cdiv(B, n_prog), _SUBLANE)
        n_prog = _cdiv(B, TB)
    B_pad = TB * n_prog
    grid = (n_prog,)

    # Hidden dim padded to a lane multiple (VMEM-resident only; zero columns
    # of b1 / zero rows of W2 keep the math exact).  Output dim left at O.
    H_pad = _round_up(H, _LANE)

    # --- parameter plumbing (once under jit; no in-kernel transpose) --------
    w1t = jnp.transpose(w1).astype(jnp.bfloat16)                       # (T+I, H)
    w1t_text = jnp.pad(w1t[:T, :], ((0, 0), (0, H_pad - H)))           # (T, Hp) bf16
    w1t_image = jnp.pad(w1t[T:, :], ((0, 0), (0, H_pad - H)))          # (I, Hp) bf16
    b1_p = jnp.pad(b1.astype(jnp.float32).reshape(1, H),
                   ((0, 0), (0, H_pad - H)))                           # (1, Hp) f32
    w2t = jnp.pad(jnp.transpose(w2).astype(jnp.bfloat16),
                  ((0, H_pad - H), (0, 0)))                            # (Hp, O) bf16
    b2_p = b2.astype(jnp.float32).reshape(1, O)                        # (1, O)  f32

    text_p = jnp.pad(text_emb.astype(jnp.bfloat16), ((0, B_pad - B), (0, 0)))
    image_p = jnp.pad(image_emb.astype(jnp.bfloat16), ((0, B_pad - B), (0, 0)))

    # --- cost hint for XLA scheduling ---------------------------------------
    flops = 2 * B_pad * ((T + I) * H_pad + H_pad * O)
    bytes_accessed = (
        2 * B_pad * (T + I)                       # bf16 activations in
        + 2 * ((T + I) * H_pad + H_pad * O)       # bf16 weights
        + 4 * (H_pad + O)                         # f32 biases
        + 4 * B_pad * O                           # f32 output (not lane-padded)
    )
    cost = pl.CostEstimate(
        flops=flops,
        transcendentals=B_pad * O,                # sigmoid -> exp on EUP
        bytes_accessed=bytes_accessed,
    )

    out_padded = pl.pallas_call(
        _mlp_kernel,
        out_shape=jax.ShapeDtypeStruct((B_pad, O), jnp.float32),
        grid=grid,
        in_specs=[
            pl.BlockSpec((TB, T), lambda i: (i, 0)),         # text block (streams)
            pl.BlockSpec((TB, I), lambda i: (i, 0)),         # image block (streams)
            pl.BlockSpec((T, H_pad), lambda i: (0, 0)),      # W1.T text rows, resident
            pl.BlockSpec((I, H_pad), lambda i: (0, 0)),      # W1.T image rows, resident
            pl.BlockSpec((1, H_pad), lambda i: (0, 0)),      # b1, resident
            pl.BlockSpec((H_pad, O), lambda i: (0, 0)),      # W2.T, resident
            pl.BlockSpec((1, O), lambda i: (0, 0)),          # b2, resident
        ],
        out_specs=pl.BlockSpec((TB, O), lambda i: (i, 0)),
        compiler_params=pltpu.CompilerParams(
            dimension_semantics=("parallel",),  # batch shards across TCs on v7x
        ),
        cost_estimate=cost,
    )(text_p, image_p, w1t_text, w1t_image, b1_p, w2t, b2_p)

    # Padded rows carry sigmoid(b2) junk; always slice back to logical shape.
    return out_padded[:B, :]


if __name__ == "__main__":
    # Config implied by the module: input_size = text + image, hidden, output.
    TEXT_SIZE = 24
    IMAGE_SIZE = 40
    INPUT_SIZE = TEXT_SIZE + IMAGE_SIZE   # 64
    HIDDEN_SIZE = 32
    OUTPUT_SIZE = 8
    BATCH = 2

    key = jax.random.PRNGKey(0)
    k_txt, k_img, k_w1, k_b1, k_w2, k_b2 = jax.random.split(key, 6)

    text_emb = jax.random.normal(k_txt, (BATCH, TEXT_SIZE), dtype=jnp.float32)
    image_emb = jax.random.normal(k_img, (BATCH, IMAGE_SIZE), dtype=jnp.float32)

    # PyTorch Linear layout: weight (out, in), bias (out,).
    w1 = jax.random.normal(k_w1, (HIDDEN_SIZE, INPUT_SIZE), dtype=jnp.float32) * 0.1
    b1 = jax.random.normal(k_b1, (HIDDEN_SIZE,), dtype=jnp.float32) * 0.1
    w2 = jax.random.normal(k_w2, (OUTPUT_SIZE, HIDDEN_SIZE), dtype=jnp.float32) * 0.1
    b2 = jax.random.normal(k_b2, (OUTPUT_SIZE,), dtype=jnp.float32) * 0.1

    out = multimodal_classifier_forward(text_emb, image_emb, w1, b1, w2, b2)
    out = jax.block_until_ready(out)

    # Pure-JAX f32 reference of the forward semantics (eval-mode dropout = id).
    combined = jnp.concatenate([text_emb, image_emb], axis=1)
    ref = jax.nn.sigmoid(
        jnp.maximum(combined @ w1.T + b1[None, :], 0.0) @ w2.T + b2[None, :]
    )
    assert out.shape == (BATCH, OUTPUT_SIZE)
    # bf16 inputs/weights (f32 accumulation) vs f32 reference -> looser tolerance.
    assert jnp.allclose(out, ref, atol=2e-2, rtol=2e-2), (
        float(jnp.max(jnp.abs(out - ref)))
    )

    print("KERNEL_OK")
</pallas_src>

<mosaic_0001>
module attributes {stable_mosaic.version = 11 : i64} {
  func.func @_mlp_kernel(%arg0: i32, %arg1: memref<8x24xbf16, #tpu.memory_space<vmem>>, %arg2: memref<8x40xbf16, #tpu.memory_space<vmem>>, %arg3: memref<24x128xbf16, #tpu.memory_space<vmem>>, %arg4: memref<40x128xbf16, #tpu.memory_space<vmem>>, %arg5: memref<1x128xf32, #tpu.memory_space<vmem>>, %arg6: memref<128x8xbf16, #tpu.memory_space<vmem>>, %arg7: memref<1x8xf32, #tpu.memory_space<vmem>>, %arg8: memref<8x8xf32, #tpu.memory_space<vmem>>) attributes {dimension_semantics = [#tpu.dimension_semantics<parallel>], iteration_bounds = array<i64: 1>, scalar_prefetch = 0 : i64, scratch_operands = 0 : i64, tpu.core_type = #tpu.core_type<tc>, window_params = [{transform_indices = @transform_0, window_bounds = array<i64: 8, 24>}, {transform_indices = @transform_1, window_bounds = array<i64: 8, 40>}, {pipeline_mode = #tpu.pipeline_mode<synchronous>, transform_indices = @transform_2, window_bounds = array<i64: 24, 128>}, {pipeline_mode = #tpu.pipeline_mode<synchronous>, transform_indices = @transform_3, window_bounds = array<i64: 40, 128>}, {pipeline_mode = #tpu.pipeline_mode<synchronous>, transform_indices = @transform_4, window_bounds = array<i64: 1, 128>}, {pipeline_mode = #tpu.pipeline_mode<synchronous>, transform_indices = @transform_5, window_bounds = array<i64: 128, 8>}, {pipeline_mode = #tpu.pipeline_mode<synchronous>, transform_indices = @transform_6, window_bounds = array<i64: 1, 8>}, {transform_indices = @transform_7, window_bounds = array<i64: 8, 8>}]} {
    %c0 = arith.constant 0 : index
    %c0_0 = arith.constant 0 : index
    %0 = vector.load %arg1[%c0, %c0_0] : memref<8x24xbf16, #tpu.memory_space<vmem>>, vector<8x24xbf16>
    %c0_1 = arith.constant 0 : index
    %c0_2 = arith.constant 0 : index
    %1 = vector.load %arg3[%c0_1, %c0_2] : memref<24x128xbf16, #tpu.memory_space<vmem>>, vector<24x128xbf16>
    %cst = arith.constant dense<0.000000e+00> : vector<8x128xf32>
    %2 = tpu.matmul %0, %1, %cst {dimension_numbers = #tpu.dot_dimension_numbers<[1], [0], [0], [1], [0, 0, 1, 1], [], []>} : vector<8x24xbf16>, vector<24x128xbf16>, vector<8x128xf32> -> vector<8x128xf32>
    %c0_3 = arith.constant 0 : index
    %c0_4 = arith.constant 0 : index
    %3 = vector.load %arg2[%c0_3, %c0_4] : memref<8x40xbf16, #tpu.memory_space<vmem>>, vector<8x40xbf16>
    %c0_5 = arith.constant 0 : index
    %c0_6 = arith.constant 0 : index
    %4 = vector.load %arg4[%c0_5, %c0_6] : memref<40x128xbf16, #tpu.memory_space<vmem>>, vector<40x128xbf16>
    %cst_7 = arith.constant dense<0.000000e+00> : vector<8x128xf32>
    %5 = tpu.matmul %3, %4, %cst_7 {dimension_numbers = #tpu.dot_dimension_numbers<[1], [0], [0], [1], [0, 0, 1, 1], [], []>} : vector<8x40xbf16>, vector<40x128xbf16>, vector<8x128xf32> -> vector<8x128xf32>
    %6 = arith.addf %2, %5 : vector<8x128xf32>
    %c0_8 = arith.constant 0 : index
    %c0_9 = arith.constant 0 : index
    %7 = vector.load %arg5[%c0_8, %c0_9] : memref<1x128xf32, #tpu.memory_space<vmem>>, vector<1x128xf32>
    %8 = vector.broadcast %7 : vector<1x128xf32> to vector<8x128xf32>
    %9 = arith.addf %6, %8 : vector<8x128xf32>
    %cst_10 = arith.constant 0.000000e+00 : f32
    %10 = vector.broadcast %cst_10 : f32 to vector<8x128xf32>
    %11 = arith.maximumf %9, %10 : vector<8x128xf32>
    %12 = arith.truncf %11 : vector<8x128xf32> to vector<8x128xbf16>
    %c0_11 = arith.constant 0 : index
    %c0_12 = arith.constant 0 : index
    %13 = vector.load %arg6[%c0_11, %c0_12] : memref<128x8xbf16, #tpu.memory_space<vmem>>, vector<128x8xbf16>
    %cst_13 = arith.constant dense<0.000000e+00> : vector<8x8xf32>
    %14 = tpu.matmul %12, %13, %cst_13 {dimension_numbers = #tpu.dot_dimension_numbers<[1], [0], [0], [1], [0, 0, 1, 1], [], []>} : vector<8x128xbf16>, vector<128x8xbf16>, vector<8x8xf32> -> vector<8x8xf32>
    %c0_14 = arith.constant 0 : index
    %c0_15 = arith.constant 0 : index
    %15 = vector.load %arg7[%c0_14, %c0_15] : memref<1x8xf32, #tpu.memory_space<vmem>>, vector<1x8xf32>
    %16 = vector.broadcast %15 : vector<1x8xf32> to vector<8x8xf32>
    %17 = arith.addf %14, %16 : vector<8x8xf32>
    %18 = arith.negf %17 : vector<8x8xf32>
    %19 = math.exp %18 : vector<8x8xf32>
    %cst_16 = arith.constant 1.000000e+00 : f32
    %20 = vector.broadcast %cst_16 : f32 to vector<8x8xf32>
    %21 = arith.addf %20, %19 : vector<8x8xf32>
    %22 = arith.divf %20, %21 : vector<8x8xf32>
    %c0_17 = arith.constant 0 : index
    %c0_18 = arith.constant 0 : index
    %23 = vector.load %arg8[%c0_17, %c0_18] : memref<8x8xf32, #tpu.memory_space<vmem>>, vector<8x8xf32>
    tpu.vector_store %arg8[%c0_17, %c0_18], %22 {strides = array<i32>} : memref<8x8xf32, #tpu.memory_space<vmem>>, vector<8x8xf32>,
    return
  }
  func.func @transform_0(%arg0: i32) -> (i32, i32) {
    %c0_i32 = arith.constant 0 : i32
    %c0_i32_0 = arith.constant 0 : i32
    return %arg0, %c0_i32 : i32, i32
  }
  func.func @transform_1(%arg0: i32) -> (i32, i32) {
    %c0_i32 = arith.constant 0 : i32
    %c0_i32_0 = arith.constant 0 : i32
    return %arg0, %c0_i32 : i32, i32
  }
  func.func @transform_2(%arg0: i32) -> (i32, i32) {
    %c0_i32 = arith.constant 0 : i32
    %c0_i32_0 = arith.constant 0 : i32
    %c0_i32_1 = arith.constant 0 : i32
    return %c0_i32, %c0_i32_0 : i32, i32
  }
  func.func @transform_3(%arg0: i32) -> (i32, i32) {
    %c0_i32 = arith.constant 0 : i32
    %c0_i32_0 = arith.constant 0 : i32
    %c0_i32_1 = arith.constant 0 : i32
    return %c0_i32, %c0_i32_0 : i32, i32
  }
  func.func @transform_4(%arg0: i32) -> (i32, i32) {
    %c0_i32 = arith.constant 0 : i32
    %c0_i32_0 = arith.constant 0 : i32
    %c0_i32_1 = arith.constant 0 : i32
    return %c0_i32, %c0_i32_0 : i32, i32
  }
  func.func @transform_5(%arg0: i32) -> (i32, i32) {
    %c0_i32 = arith.constant 0 : i32
    %c0_i32_0 = arith.constant 0 : i32
    %c0_i32_1 = arith.constant 0 : i32
    return %c0_i32, %c0_i32_0 : i32, i32
  }
  func.func @transform_6(%arg0: i32) -> (i32, i32) {
    %c0_i32 = arith.constant 0 : i32
    %c0_i32_0 = arith.constant 0 : i32
    %c0_i32_1 = arith.constant 0 : i32
    return %c0_i32, %c0_i32_0 : i32, i32
  }
  func.func @transform_7(%arg0: i32) -> (i32, i32) {
    %c0_i32 = arith.constant 0 : i32
    %c0_i32_0 = arith.constant 0 : i32
    return %arg0, %c0_i32 : i32, i32
  }
}

</mosaic_0001>

<llo_original>
// kernel: multimodal_classifier_forward.1
$region0: #{multimodal_classifier_forward.1}
  #allocation0 [shape = 'u32[]', space=smem, size = 0x4, offset = 0x4, fixed_abs, tag = 'smem constant byte address 0x4 - core index']
  #allocation1 [shape = 'u32[72,128]{1,0:T(1,128)}', space=vmem, size = 0x9000, scoped, tag = 'internal scratch']
  %s0 = inlined_call_operand.vmem [shape: bf16[8,24], index: 0, kind: input, shape index: {}]
  %s1 = inlined_call_operand.vmem [shape: bf16[8,40], index: 1, kind: input, shape index: {}]
  %s2 = inlined_call_operand.vmem [shape: bf16[24,128], index: 2, kind: input, shape index: {}]
  %s3 = inlined_call_operand.vmem [shape: bf16[40,128], index: 3, kind: input, shape index: {}]
  %s4 = inlined_call_operand.vmem [shape: f32[1,128], index: 4, kind: input, shape index: {}]
  %s5 = inlined_call_operand.vmem [shape: bf16[128,8], index: 5, kind: input, shape index: {}]
  %s6 = inlined_call_operand.vmem [shape: f32[1,8], index: 6, kind: input, shape index: {}]
  %s7 = inlined_call_operand.vmem [shape: f32[8,8], index: 7, kind: output, shape index: {}]
  %s8 = sld [smem:[#allocation0]]
  $region38: #{multimodal_classifier_forward.1} parent=0
    _
  %s10 = ssub.s32 1, %s8
  %s11 = scalar_select 0, %s10, %s8
  // Predicated region
  $region2: #{multimodal_classifier_forward.1} parent=0 // pred_check
    _
  $region3: #{multimodal_classifier_forward.1} parent=0 // pred_check_branch
    %13 = sbr.rel (0) target = $region5
  $region4: #{multimodal_classifier_forward.1} parent=0 // pred_region
    _
  $region5: #{multimodal_classifier_forward.1} parent=0 // pred_fallthru
    _
  // Predicated region
  $region6: #{multimodal_classifier_forward.1} parent=0 // pred_check
    _
  $region7: #{multimodal_classifier_forward.1} parent=0 // pred_check_branch
    %15 = sbr.rel (0) target = $region9
  $region8: #{multimodal_classifier_forward.1} parent=0 // pred_region
    _
  $region9: #{multimodal_classifier_forward.1} parent=0 // pred_fallthru
    _
  // Predicated region
  $region10: #{multimodal_classifier_forward.1} parent=0 // pred_check
    _
  $region11: #{multimodal_classifier_forward.1} parent=0 // pred_check_branch
    %17 = sbr.rel (0) target = $region13
  $region12: #{multimodal_classifier_forward.1} parent=0 // pred_region
    _
  $region13: #{multimodal_classifier_forward.1} parent=0 // pred_fallthru
    _
  // Predicated region
  $region14: #{multimodal_classifier_forward.1} parent=0 // pred_check
    _
  $region15: #{multimodal_classifier_forward.1} parent=0 // pred_check_branch
    %19 = sbr.rel (0) target = $region17
  $region16: #{multimodal_classifier_forward.1} parent=0 // pred_region
    _
  $region17: #{multimodal_classifier_forward.1} parent=0 // pred_fallthru
    _
  // Predicated region
  $region18: #{multimodal_classifier_forward.1} parent=0 // pred_check
    _
  $region19: #{multimodal_classifier_forward.1} parent=0 // pred_check_branch
    %21 = sbr.rel (0) target = $region21
  $region20: #{multimodal_classifier_forward.1} parent=0 // pred_region
    _
  $region21: #{multimodal_classifier_forward.1} parent=0 // pred_fallthru
    _
  // Predicated region
  $region22: #{multimodal_classifier_forward.1} parent=0 // pred_check
    _
  $region23: #{multimodal_classifier_forward.1} parent=0 // pred_check_branch
    %23 = sbr.rel (0) target = $region25
  $region24: #{multimodal_classifier_forward.1} parent=0 // pred_region
    _
  $region25: #{multimodal_classifier_forward.1} parent=0 // pred_fallthru
    _
  // Predicated region
  $region26: #{multimodal_classifier_forward.1} parent=0 // pred_check
    _
  $region27: #{multimodal_classifier_forward.1} parent=0 // pred_check_branch
    %25 = sbr.rel (0) target = $region29
  $region28: #{multimodal_classifier_forward.1} parent=0 // pred_region
    _
  $region29: #{multimodal_classifier_forward.1} parent=0 // pred_fallthru
    _
  %v27 = vld [vmem:[%s0] sm:$0xf]
  %v28 = vld [vmem:[%s2] sm:$0xf]
  %v29 = vld [vmem:[%s2 + $0x4] sm:$0xf]
  %v30 = vld [vmem:[%s2 + $0x8] sm:$0xf]
  %v31 = vld [vmem:[%s1] sm:$0xf]
  %v32 = vld [vmem:[%s3] sm:$0xf]
  %v33 = vld [vmem:[%s3 + $0x4] sm:$0xf]
  %v34 = vld [vmem:[%s3 + $0x8] sm:$0xf]
  %v35 = vld [vmem:[%s3 + $0xc] sm:$0xf]
  %v36 = vld [vmem:[%s3 + $0x10] sm:$0xf]
  %v42 = vunpack.c.l.b16 %v32
  %v43 = vunpack.c.l.b16 %v33
  %v44 = vunpack.c.l.b16 %v34
  %v45 = vunpack.c.l.b16 %v35
  %v46 = vunpack.c.l.b16 %v36
  %v47 = vpack.c.b16 %v43, %v42
  %v48 = vpack.c.b16 %v45, %v44
  %v49 = vpack.c.b16 %v46, %v46
  %vm52 = vcmask 326656
  %v54 = vsel %vm52, %v31, 0
  %vm56 = vcmask 1043456
  %v58 = vsel %vm56, %v49, 0
  %60 = vmatpush.bf16.msra.mxu0 0
  %61 = vmatpush.bf16.msra.mxu0 0
  %62 = vmatpush.bf16.msra.mxu0 0
  %63 = vmatpush.bf16.msra.mxu0 0
  %64 = vmatpush.bf16.msra.mxu0 0
  %65 = vmatpush.bf16.msra.mxu0 %v58
  %66 = vmatpush.bf16.msra.mxu0 %v48
  %67 = vmatpush.bf16.msra.mxu0 %v47
  %68 = vmatmul.bf16.gmra.mxu0 %v54
  %v69 = vpop.f32.mrf.mxu0
  %v70 = vadd.f32 0.0, %v69
  %v71 = vpop.f32.mrf.mxu0
  %72 = vdwg.mxu0
  %v76 = vunpack.c.l.b16 %v28
  %v77 = vunpack.c.l.b16 %v29
  %v78 = vunpack.c.l.b16 %v30
  %v79 = vpack.c.b16 %v77, %v76
  %v80 = vpack.c.b16 %v78, %v78
  %vm82 = vcmask 195584
  %v84 = vsel %vm82, %v27, 0
  %v87 = vsel %vm56, %v80, 0
  %89 = vmatpush.bf16.msra.mxu0 0
  %90 = vmatpush.bf16.msra.mxu0 0
  %91 = vmatpush.bf16.msra.mxu0 0
  %92 = vmatpush.bf16.msra.mxu0 0
  %93 = vmatpush.bf16.msra.mxu0 0
  %94 = vmatpush.bf16.msra.mxu0 0
  %95 = vmatpush.bf16.msra.mxu0 %v87
  %96 = vmatpush.bf16.msra.mxu0 %v79
  %97 = vmatmul.bf16.gmra.mxu0 %v84
  %v98 = vpop.f32.mrf.mxu0
  %v99 = vadd.f32 %v70, %v98
  %v100 = vpop.f32.mrf.mxu0
  %101 = vdwg.mxu0
  %v102 = vld [vmem:[%s4] sm:$0x1]
  %v104 = vperm.slane %v102, 0
  %v106 = vadd.f32 %v99, %v104
  %v107 = vmax.f32 %v106, 0.0
  %v108 = vpack.c.bf16 %v107, %v107
  %v109 = vld [vmem:[%s5] sm:$0xf]
  %v110 = vld [vmem:[%s5 + $0x4] sm:$0xf]
  %v111 = vld [vmem:[%s5 + $0x8] sm:$0xf]
  %v112 = vld [vmem:[%s5 + $0xc] sm:$0xf]
  %v113 = vld [vmem:[%s5 + $0x10] sm:$0xf]
  %v114 = vld [vmem:[%s5 + $0x14] sm:$0xf]
  %v115 = vld [vmem:[%s5 + $0x18] sm:$0xf]
  %v116 = vld [vmem:[%s5 + $0x1c] sm:$0xf]
  %v117 = vld [vmem:[%s5 + $0x20] sm:$0xf]
  %v118 = vld [vmem:[%s5 + $0x24] sm:$0xf]
  %v119 = vld [vmem:[%s5 + $0x28] sm:$0xf]
  %v120 = vld [vmem:[%s5 + $0x2c] sm:$0xf]
  %v121 = vld [vmem:[%s5 + $0x30] sm:$0xf]
  %v122 = vld [vmem:[%s5 + $0x34] sm:$0xf]
  %v123 = vld [vmem:[%s5 + $0x38] sm:$0xf]
  %v124 = vld [vmem:[%s5 + $0x3c] sm:$0xf]
  %v125 = vld [vmem:[%s6] sm:$0x1]
  %v127 = vperm.slane %v125, 0
  %v145 = vunpack.c.l.b16 %v109
  %v146 = vunpack.c.l.b16 %v110
  %v147 = vunpack.c.l.b16 %v111
  %v148 = vunpack.c.l.b16 %v112
  %v149 = vunpack.c.l.b16 %v113
  %v150 = vunpack.c.l.b16 %v114
  %v151 = vunpack.c.l.b16 %v115
  %v152 = vunpack.c.l.b16 %v116
  %v153 = vunpack.c.l.b16 %v117
  %v154 = vunpack.c.l.b16 %v118
  %v155 = vunpack.c.l.b16 %v119
  %v156 = vunpack.c.l.b16 %v120
  %v157 = vunpack.c.l.b16 %v121
  %v158 = vunpack.c.l.b16 %v122
  %v159 = vunpack.c.l.b16 %v123
  %v160 = vunpack.c.l.b16 %v124
  %v161 = vpack.c.b16 %v146, %v145
  %v162 = vpack.c.b16 %v148, %v147
  %v163 = vpack.c.b16 %v150, %v149
  %v164 = vpack.c.b16 %v152, %v151
  %v165 = vpack.c.b16 %v154, %v153
  %v166 = vpack.c.b16 %v156, %v155
  %v167 = vpack.c.b16 %v158, %v157
  %v168 = vpack.c.b16 %v160, %v159
  %177 = vmatpush.bf16.msra.mxu0 %v168
  %178 = vmatpush.bf16.msra.mxu0 %v167
  %179 = vmatpush.bf16.msra.mxu0 %v166
  %180 = vmatpush.bf16.msra.mxu0 %v165
  %181 = vmatpush.bf16.msra.mxu0 %v164
  %182 = vmatpush.bf16.msra.mxu0 %v163
  %183 = vmatpush.bf16.msra.mxu0 %v162
  %184 = vmatpush.bf16.msra.mxu0 %v161
  %185 = vmatmul.bf16.gmra.mxu0 %v108
  %v186 = vpop.f32.mrf.mxu0
  %v187 = vadd.f32 %v127, %v186
  %v188 = vpop.f32.mrf.mxu0
  %189 = vdwg.mxu0
  %v190 = vxor.u32 %v187, 2147483648
  %v191 = vmul.f32 %v190, 1.442695
  %v192 = vpow.pop %v191
  %v193 = vadd.f32 %v192, 1.0
  %v194 = vrcp.pop %v193
  %v195 = vmul.f32 %v193, %v194
  %v196 = vsub.f32 1.0, %v195
  %v197 = vmul.f32 %v194, %v196
  %v198 = vadd.f32 %v194, %v197
  %vm199 = vweird.f32 %v193
  %vm200 = vweird.f32 %v194
  %vm201 = vmor %vm199, %vm200
  %v202 = vsel %vm201, %v194, %v198
  %v203 = vand.u32 2147483647, %v193
  %vm204 = vcmp.eq.f32.partialorder %v203, 8.507059e+37
  %v205 = vand.u32 %v193, 2147483648
  %v206 = vor.u32 1.1754944e-38, %v205
  %v207 = vsel %vm204, %v206, %v202
  %v208 = vmul.f32 1.0, %v207
  %vm209 = vcmask 64512
  %210 = vst.msk [vmem:[%s7] sm:$0xff] %vm209, %v208
  // Predicated region
  $region30: #{multimodal_classifier_forward.1} parent=0 // pred_check
    _
  $region31: #{multimodal_classifier_forward.1} parent=0 // pred_check_branch
    %212 = sbr.rel (0) target = $region33
  $region32: #{multimodal_classifier_forward.1} parent=0 // pred_region
    _
  $region33: #{multimodal_classifier_forward.1} parent=0 // pred_fallthru
    _
  // Predicated region
  $region34: #{multimodal_classifier_forward.1} parent=0 // pred_check
    _
  $region35: #{multimodal_classifier_forward.1} parent=0 // pred_check_branch
    %214 = sbr.rel (0) target = $region37
  $region36: #{multimodal_classifier_forward.1} parent=0 // pred_region
    _
  $region37: #{multimodal_classifier_forward.1} parent=0 // pred_fallthru
    _

</llo_original>
